<compile_context>
chip_gen: v6e
topology: v6e:2x2x1
jax: 0.10.0
libtpu: 0.0.40
codegen_flags: <defaults>
</compile_context>

<pallas_src>
import jax
import jax.numpy as jnp
from jax.experimental import pallas as pl
from jax.experimental.pallas import tpu as pltpu


def _round_up(x, m):
    return ((x + m - 1) // m) * m


_SINGLE_TILE_MAX = 1024   # batches up to this run as one exact-shape grid step


def _value_net_kernel(x_ref,
                      w1_ref, b1_ref,
                      w2_ref, b2_ref,
                      w3_ref, b3_ref,
                      w4_ref, b4_ref,
                      out_ref):
    cd = w1_ref.dtype                       # bf16 MXU input dtype
    x = x_ref[...].astype(cd)               # in-kernel cast (VPU; hidden under DMA/MXU)
    # fc1 + relu
    h = jnp.dot(x, w1_ref[...], preferred_element_type=jnp.float32)
    h = jnp.maximum(h + b1_ref[...], 0.0)
    # fc2 + relu
    h = jnp.dot(h.astype(cd), w2_ref[...], preferred_element_type=jnp.float32)
    h = jnp.maximum(h + b2_ref[...], 0.0)
    # fc3 + relu
    h = jnp.dot(h.astype(cd), w3_ref[...], preferred_element_type=jnp.float32)
    h = jnp.maximum(h + b3_ref[...], 0.0)   # (tile_b, 128) f32

    # fc4 (128 -> 1): VPU multiply + XLU cross-lane sum (f32), not a 1-column
    # MXU matmul.
    if out_ref.shape[-1] == 1:
        # Small single-tile path: exact (B, 1) output block (lane sparsity is
        # irrelevant at this size).
        v = jnp.sum(h * w4_ref[...], axis=-1, keepdims=True) + b4_ref[...]
    else:
        # Lane-dense path: group batch rows by 128 and emit (tile//128, 128)
        # -> full-width unmasked stores, no 128x VMEM padding of the output.
        rows = out_ref.shape[0]
        hh = h.reshape(rows, 128, h.shape[-1])     # tile-aligned major split (free)
        v = jnp.sum(hh * w4_ref[...], axis=-1) + b4_ref[...]
    out_ref[...] = v.astype(out_ref.dtype)


def _choose_tile(batch, max_tile):
    """Batch rows per grid step for the multi-tile path.

    The tile must be a multiple of 1024 so the lane-dense (tile//128, 128)
    output block satisfies the (8, 128) divisibility rule.  Preference order:
    (a) least padded rows in the ragged last tile, (b) >= 2 grid steps (v7x
    megacore), (c) fewer grid steps (less fixed per-step overhead).
    """
    max_tile = max(1024, (max_tile // 1024) * 1024)
    best_key, best_tile = None, 1024
    for t in range(1024, max_tile + 1, 1024):
        g = pl.cdiv(batch, t)
        key = (g * t, 0 if g >= 2 else 1, g)
        if best_key is None or key < best_key:
            best_key, best_tile = key, t
    return best_tile


def value_network_forward(x, params, *, tile_b=2048, compute_dtype=jnp.bfloat16):
    """x: (B, obs) float32.  Returns (B, 1) float32 value estimates."""
    B, obs = x.shape

    w1 = params["w1"].astype(compute_dtype)
    w2 = params["w2"].astype(compute_dtype)
    w3 = params["w3"].astype(compute_dtype)
    w4 = params["w4"].astype(jnp.float32)        # (1, 128) row vector (VPU path)
    b1 = params["b1"].astype(jnp.float32)
    b2 = params["b2"].astype(jnp.float32)
    b3 = params["b3"].astype(jnp.float32)
    b4 = params["b4"].astype(jnp.float32)
    weights = (w1, b1, w2, b2, w3, b3, w4, b4)

    def pinned(i):           # same block every step -> weights resident in VMEM
        return (0, 0)

    weight_specs = [pl.BlockSpec(w.shape, pinned) for w in weights]

    if B <= _SINGLE_TILE_MAX:
        # Single grid step; every block is the exact array shape (no padding,
        # no ragged reads).
        return pl.pallas_call(
            _value_net_kernel,
            out_shape=jax.ShapeDtypeStruct((B, 1), jnp.float32),
            grid=(1,),
            in_specs=[pl.BlockSpec((B, obs), lambda i: (0, 0))] + weight_specs,
            out_specs=pl.BlockSpec((B, 1), lambda i: (0, 0)),
        )(x, *weights)

    # Multi-tile path: stream f32 x in (tile, obs) tiles (bf16 cast happens in
    # the kernel).  grid = cdiv(B, tile): the ragged last tile reads
    # unspecified data past row B and those rows' outputs are sliced off below
    # -- no wrapper-side pad/cast copy of the whole batch.
    tile = _choose_tile(B, tile_b)
    grid_steps = pl.cdiv(B, tile)
    out_rows = grid_steps * (tile // 128)

    # VMEM @ tile=2048: ~0.5 MiB double-buffered x + ~5 MiB f32/bf16
    # intermediates + ~0.14 MiB resident weights + 16 KiB output buffers,
    # well inside default scoped VMEM on v5e/v6e/v7x.
    out = pl.pallas_call(
        _value_net_kernel,
        out_shape=jax.ShapeDtypeStruct((out_rows, 128), jnp.float32),
        grid=(grid_steps,),
        in_specs=[pl.BlockSpec((tile, obs), lambda i: (i, 0))] + weight_specs,
        out_specs=pl.BlockSpec((tile // 128, 128), lambda i: (i, 0)),
        compiler_params=pltpu.CompilerParams(
            dimension_semantics=("parallel",)),   # megacore shard on v7x
    )(x, *weights)
    return out.reshape(-1)[:B].reshape(B, 1)


def init_params(key, observation_space):
    """torch.nn.Linear-style U[-1/sqrt(fan_in), 1/sqrt(fan_in)] init.
    fc1..fc3 weights stored as (in, out) = torch_weight.T; fc4 weight kept in
    torch layout (1, 128).  Biases stored as (1, out)."""
    dims = [(observation_space, 128), (128, 256), (256, 128), (128, 1)]
    params = {}
    keys = jax.random.split(key, 2 * len(dims))
    for i, (fan_in, fan_out) in enumerate(dims):
        bound = 1.0 / float(fan_in) ** 0.5
        w = jax.random.uniform(keys[2 * i], (fan_in, fan_out), jnp.float32,
                               -bound, bound)
        if i == 3:
            w = w.T  # fc4 stored as (1, 128) row vector
        params[f"w{i+1}"] = w
        params[f"b{i+1}"] = jax.random.uniform(keys[2 * i + 1], (1, fan_out),
                                               jnp.float32, -bound, bound)
    return params


def reference_forward_f32(x, params):
    """Exact PyTorch-module semantics in f32."""
    h = jnp.maximum(x @ params["w1"] + params["b1"], 0.0)
    h = jnp.maximum(h @ params["w2"] + params["b2"], 0.0)
    h = jnp.maximum(h @ params["w3"] + params["b3"], 0.0)
    return h @ params["w4"].T + params["b4"]


def reference_forward_bf16(x, params, compute_dtype=jnp.bfloat16):
    """Same bf16-in / f32-accumulate recipe as the kernel, in plain JAX."""
    cd = compute_dtype
    h = jnp.dot(x.astype(cd), params["w1"].astype(cd),
                preferred_element_type=jnp.float32)
    h = jnp.maximum(h + params["b1"], 0.0)
    h = jnp.dot(h.astype(cd), params["w2"].astype(cd),
                preferred_element_type=jnp.float32)
    h = jnp.maximum(h + params["b2"], 0.0)
    h = jnp.dot(h.astype(cd), params["w3"].astype(cd),
                preferred_element_type=jnp.float32)
    h = jnp.maximum(h + params["b3"], 0.0)
    return jnp.sum(h * params["w4"], axis=-1, keepdims=True) + params["b4"]


if __name__ == "__main__":
    key = jax.random.PRNGKey(0)
    k_params, k_x1, k_x2, k_x3 = jax.random.split(key, 4)

    observation_space = 32   # small synthetic obs dim
    params = init_params(k_params, observation_space)

    # Tiny batch: single-tile path, exact-shape blocks.
    x_small = jax.random.normal(k_x1, (8, observation_space), jnp.float32)
    out_small = jax.block_until_ready(value_network_forward(x_small, params))

    # Awkward medium batch: still single-tile, no padding at all.
    x_med = jax.random.normal(k_x2, (300, observation_space), jnp.float32)
    out_med = jax.block_until_ready(value_network_forward(x_med, params))

    # Multi-tile path: 3 pipelined 1024-row tiles, ragged last tile (2500),
    # lane-dense (tile//128, 128) output blocks, megacore-parallel grid.
    x_big = jax.random.normal(k_x3, (2500, observation_space), jnp.float32)
    out_big = jax.block_until_ready(value_network_forward(x_big, params))

    for x, out in ((x_small, out_small), (x_med, out_med), (x_big, out_big)):
        assert out.shape == (x.shape[0], 1)
        ref_bf16 = reference_forward_bf16(x, params)
        ref_f32 = reference_forward_f32(x, params)
        assert jnp.allclose(out, ref_bf16, atol=2e-3, rtol=2e-3), \
            "mismatch vs bf16-matched reference"
        assert jnp.allclose(out, ref_f32, atol=5e-2, rtol=5e-2), \
            "mismatch vs f32 reference (bf16 matmul tolerance)"

    print("KERNEL_OK")
</pallas_src>

<mosaic_0001>
module attributes {stable_mosaic.version = 11 : i64} {
  func.func @_value_net_kernel(%arg0: i32, %arg1: memref<8x32xf32, #tpu.memory_space<vmem>>, %arg2: memref<32x128xbf16, #tpu.memory_space<vmem>>, %arg3: memref<1x128xf32, #tpu.memory_space<vmem>>, %arg4: memref<128x256xbf16, #tpu.memory_space<vmem>>, %arg5: memref<1x256xf32, #tpu.memory_space<vmem>>, %arg6: memref<256x128xbf16, #tpu.memory_space<vmem>>, %arg7: memref<1x128xf32, #tpu.memory_space<vmem>>, %arg8: memref<1x128xf32, #tpu.memory_space<vmem>>, %arg9: memref<1x1xf32, #tpu.memory_space<vmem>>, %arg10: memref<8x1xf32, #tpu.memory_space<vmem>>) attributes {dimension_semantics = [#tpu.dimension_semantics<arbitrary>], iteration_bounds = array<i64: 1>, scalar_prefetch = 0 : i64, scratch_operands = 0 : i64, tpu.core_type = #tpu.core_type<tc>, window_params = [{pipeline_mode = #tpu.pipeline_mode<synchronous>, transform_indices = @transform_0, window_bounds = array<i64: 8, 32>}, {pipeline_mode = #tpu.pipeline_mode<synchronous>, transform_indices = @transform_1, window_bounds = array<i64: 32, 128>}, {pipeline_mode = #tpu.pipeline_mode<synchronous>, transform_indices = @transform_2, window_bounds = array<i64: 1, 128>}, {pipeline_mode = #tpu.pipeline_mode<synchronous>, transform_indices = @transform_3, window_bounds = array<i64: 128, 256>}, {pipeline_mode = #tpu.pipeline_mode<synchronous>, transform_indices = @transform_4, window_bounds = array<i64: 1, 256>}, {pipeline_mode = #tpu.pipeline_mode<synchronous>, transform_indices = @transform_5, window_bounds = array<i64: 256, 128>}, {pipeline_mode = #tpu.pipeline_mode<synchronous>, transform_indices = @transform_6, window_bounds = array<i64: 1, 128>}, {pipeline_mode = #tpu.pipeline_mode<synchronous>, transform_indices = @transform_7, window_bounds = array<i64: 1, 128>}, {pipeline_mode = #tpu.pipeline_mode<synchronous>, transform_indices = @transform_8, window_bounds = array<i64: 1, 1>}, {pipeline_mode = #tpu.pipeline_mode<synchronous>, transform_indices = @transform_9, window_bounds = array<i64: 8, 1>}]} {
    %c0 = arith.constant 0 : index
    %c0_0 = arith.constant 0 : index
    %0 = vector.load %arg1[%c0, %c0_0] : memref<8x32xf32, #tpu.memory_space<vmem>>, vector<8x32xf32>
    %1 = arith.truncf %0 : vector<8x32xf32> to vector<8x32xbf16>
    %c0_1 = arith.constant 0 : index
    %c0_2 = arith.constant 0 : index
    %2 = vector.load %arg2[%c0_1, %c0_2] : memref<32x128xbf16, #tpu.memory_space<vmem>>, vector<32x128xbf16>
    %cst = arith.constant dense<0.000000e+00> : vector<8x128xf32>
    %3 = tpu.matmul %1, %2, %cst {dimension_numbers = #tpu.dot_dimension_numbers<[1], [0], [0], [1], [0, 0, 1, 1], [], []>} : vector<8x32xbf16>, vector<32x128xbf16>, vector<8x128xf32> -> vector<8x128xf32>
    %c0_3 = arith.constant 0 : index
    %c0_4 = arith.constant 0 : index
    %4 = vector.load %arg3[%c0_3, %c0_4] : memref<1x128xf32, #tpu.memory_space<vmem>>, vector<1x128xf32>
    %5 = vector.broadcast %4 : vector<1x128xf32> to vector<8x128xf32>
    %6 = arith.addf %3, %5 : vector<8x128xf32>
    %cst_5 = arith.constant 0.000000e+00 : f32
    %7 = vector.broadcast %cst_5 : f32 to vector<8x128xf32>
    %8 = arith.maximumf %6, %7 : vector<8x128xf32>
    %9 = arith.truncf %8 : vector<8x128xf32> to vector<8x128xbf16>
    %c0_6 = arith.constant 0 : index
    %c0_7 = arith.constant 0 : index
    %10 = vector.load %arg4[%c0_6, %c0_7] : memref<128x256xbf16, #tpu.memory_space<vmem>>, vector<128x256xbf16>
    %cst_8 = arith.constant dense<0.000000e+00> : vector<8x256xf32>
    %11 = tpu.matmul %9, %10, %cst_8 {dimension_numbers = #tpu.dot_dimension_numbers<[1], [0], [0], [1], [0, 0, 1, 1], [], []>} : vector<8x128xbf16>, vector<128x256xbf16>, vector<8x256xf32> -> vector<8x256xf32>
    %c0_9 = arith.constant 0 : index
    %c0_10 = arith.constant 0 : index
    %12 = vector.load %arg5[%c0_9, %c0_10] : memref<1x256xf32, #tpu.memory_space<vmem>>, vector<1x256xf32>
    %13 = vector.broadcast %12 : vector<1x256xf32> to vector<8x256xf32>
    %14 = arith.addf %11, %13 : vector<8x256xf32>
    %cst_11 = arith.constant 0.000000e+00 : f32
    %15 = vector.broadcast %cst_11 : f32 to vector<8x256xf32>
    %16 = arith.maximumf %14, %15 : vector<8x256xf32>
    %17 = arith.truncf %16 : vector<8x256xf32> to vector<8x256xbf16>
    %c0_12 = arith.constant 0 : index
    %c0_13 = arith.constant 0 : index
    %18 = vector.load %arg6[%c0_12, %c0_13] : memref<256x128xbf16, #tpu.memory_space<vmem>>, vector<256x128xbf16>
    %cst_14 = arith.constant dense<0.000000e+00> : vector<8x128xf32>
    %19 = tpu.matmul %17, %18, %cst_14 {dimension_numbers = #tpu.dot_dimension_numbers<[1], [0], [0], [1], [0, 0, 1, 1], [], []>} : vector<8x256xbf16>, vector<256x128xbf16>, vector<8x128xf32> -> vector<8x128xf32>
    %c0_15 = arith.constant 0 : index
    %c0_16 = arith.constant 0 : index
    %20 = vector.load %arg7[%c0_15, %c0_16] : memref<1x128xf32, #tpu.memory_space<vmem>>, vector<1x128xf32>
    %21 = vector.broadcast %20 : vector<1x128xf32> to vector<8x128xf32>
    %22 = arith.addf %19, %21 : vector<8x128xf32>
    %cst_17 = arith.constant 0.000000e+00 : f32
    %23 = vector.broadcast %cst_17 : f32 to vector<8x128xf32>
    %24 = arith.maximumf %22, %23 : vector<8x128xf32>
    %c0_18 = arith.constant 0 : index
    %c0_19 = arith.constant 0 : index
    %25 = vector.load %arg8[%c0_18, %c0_19] : memref<1x128xf32, #tpu.memory_space<vmem>>, vector<1x128xf32>
    %26 = vector.broadcast %25 : vector<1x128xf32> to vector<8x128xf32>
    %27 = arith.mulf %24, %26 : vector<8x128xf32>
    %cst_20 = arith.constant dense<0.000000e+00> : vector<8xf32>
    %28 = vector.multi_reduction <add>, %27, %cst_20 [1] : vector<8x128xf32> to vector<8xf32>
    %29 = vector.shape_cast %28 : vector<8xf32> to vector<8x1xf32>
    %c0_21 = arith.constant 0 : index
    %c0_22 = arith.constant 0 : index
    %30 = vector.load %arg9[%c0_21, %c0_22] : memref<1x1xf32, #tpu.memory_space<vmem>>, vector<1x1xf32>
    %31 = vector.broadcast %30 : vector<1x1xf32> to vector<8x1xf32>
    %32 = arith.addf %29, %31 : vector<8x1xf32>
    %c0_23 = arith.constant 0 : index
    %c0_24 = arith.constant 0 : index
    %33 = vector.load %arg10[%c0_23, %c0_24] : memref<8x1xf32, #tpu.memory_space<vmem>>, vector<8x1xf32>
    tpu.vector_store %arg10[%c0_23, %c0_24], %32 {strides = array<i32>} : memref<8x1xf32, #tpu.memory_space<vmem>>, vector<8x1xf32>,
    return
  }
  func.func @transform_0(%arg0: i32) -> (i32, i32) {
    %c0_i32 = arith.constant 0 : i32
    %c0_i32_0 = arith.constant 0 : i32
    %c0_i32_1 = arith.constant 0 : i32
    return %c0_i32, %c0_i32_0 : i32, i32
  }
  func.func @transform_1(%arg0: i32) -> (i32, i32) {
    %c0_i32 = arith.constant 0 : i32
    %c0_i32_0 = arith.constant 0 : i32
    %c0_i32_1 = arith.constant 0 : i32
    return %c0_i32, %c0_i32_0 : i32, i32
  }
  func.func @transform_2(%arg0: i32) -> (i32, i32) {
    %c0_i32 = arith.constant 0 : i32
    %c0_i32_0 = arith.constant 0 : i32
    %c0_i32_1 = arith.constant 0 : i32
    return %c0_i32, %c0_i32_0 : i32, i32
  }
  func.func @transform_3(%arg0: i32) -> (i32, i32) {
    %c0_i32 = arith.constant 0 : i32
    %c0_i32_0 = arith.constant 0 : i32
    %c0_i32_1 = arith.constant 0 : i32
    return %c0_i32, %c0_i32_0 : i32, i32
  }
  func.func @transform_4(%arg0: i32) -> (i32, i32) {
    %c0_i32 = arith.constant 0 : i32
    %c0_i32_0 = arith.constant 0 : i32
    %c0_i32_1 = arith.constant 0 : i32
    return %c0_i32, %c0_i32_0 : i32, i32
  }
  func.func @transform_5(%arg0: i32) -> (i32, i32) {
    %c0_i32 = arith.constant 0 : i32
    %c0_i32_0 = arith.constant 0 : i32
    %c0_i32_1 = arith.constant 0 : i32
    return %c0_i32, %c0_i32_0 : i32, i32
  }
  func.func @transform_6(%arg0: i32) -> (i32, i32) {
    %c0_i32 = arith.constant 0 : i32
    %c0_i32_0 = arith.constant 0 : i32
    %c0_i32_1 = arith.constant 0 : i32
    return %c0_i32, %c0_i32_0 : i32, i32
  }
  func.func @transform_7(%arg0: i32) -> (i32, i32) {
    %c0_i32 = arith.constant 0 : i32
    %c0_i32_0 = arith.constant 0 : i32
    %c0_i32_1 = arith.constant 0 : i32
    return %c0_i32, %c0_i32_0 : i32, i32
  }
  func.func @transform_8(%arg0: i32) -> (i32, i32) {
    %c0_i32 = arith.constant 0 : i32
    %c0_i32_0 = arith.constant 0 : i32
    %c0_i32_1 = arith.constant 0 : i32
    return %c0_i32, %c0_i32_0 : i32, i32
  }
  func.func @transform_9(%arg0: i32) -> (i32, i32) {
    %c0_i32 = arith.constant 0 : i32
    %c0_i32_0 = arith.constant 0 : i32
    %c0_i32_1 = arith.constant 0 : i32
    return %c0_i32, %c0_i32_0 : i32, i32
  }
}

</mosaic_0001>

<llo_original>
// kernel: tpu_custom_call.1
$region0: #{tpu_custom_call.1}
  #allocation0 [shape = 'u32[]', space=smem, size = 0x4, offset = 0x4, fixed_abs, tag = 'smem constant byte address 0x4 - core index']
  #allocation1 [shape = 'u32[144,128]{1,0:T(1,128)}', space=vmem, size = 0x12000, scoped, tag = 'internal scratch']
  #allocation2 [shape = 'f32[1,1]{1,0:T(1,128)S(1)}', space=vmem, size = 0x200, scoped, tag = 'scoped memory for tpu_custom_call.1']
  %s0 = inlined_call_operand.hbm [shape: f32[8,32], index: 0, kind: input, shape index: {}]
  %s1 = inlined_call_operand.hbm [shape: bf16[32,128], index: 1, kind: input, shape index: {}]
  %s2 = inlined_call_operand.vmem [shape: f32[1,128], index: 2, kind: input, shape index: {}]
  %s3 = inlined_call_operand.hbm [shape: bf16[128,256], index: 3, kind: input, shape index: {}]
  %s4 = inlined_call_operand.vmem [shape: f32[1,256], index: 4, kind: input, shape index: {}]
  %s5 = inlined_call_operand.hbm [shape: bf16[256,128], index: 5, kind: input, shape index: {}]
  %s6 = inlined_call_operand.vmem [shape: f32[1,128], index: 6, kind: input, shape index: {}]
  %s7 = inlined_call_operand.vmem [shape: f32[1,128], index: 7, kind: input, shape index: {}]
  %s8 = inlined_call_operand.<no memory space> [shape: f32[1,1], index: 8, kind: input, shape index: {}]
  %s9 = inlined_call_operand.vmem [shape: f32[8,1], index: 9, kind: output, shape index: {}]
  %s10 = sld [smem:[#allocation0]]
  $region62: #{tpu_custom_call.1} parent=0
    _
  %s12 = ssub.s32 1, %s10
  %s13 = scalar_select 0, %s12, %s10
  %v14 = vstv %s8
  %15 = vst [vmem:[#allocation2] sm:$0x1] %v14
  $region1: #{tpu_custom_call.1} parent=0
    #allocation3 [shape = 'u8[4096]{0}', space=vmem, size = 0x1000, scoped, tag = 'input window, operand 0, single buffered']
    #allocation4 [shape = 's32[1]{0}', space=sflag, size = 0x4, scoped, tag = 'scoped memory for tpu_custom_call.1']
    #allocation5 [shape = 'u8[8192]{0}', space=vmem, size = 0x2000, scoped, tag = 'input window, operand 1, single buffered']
    #allocation6 [shape = 's32[1]{0}', space=sflag, size = 0x4, scoped, tag = 'scoped memory for tpu_custom_call.1']
    #allocation7 [shape = 'u8[65536]{0}', space=vmem, size = 0x10000, scoped, tag = 'input window, operand 3, single buffered']
    #allocation8 [shape = 'u8[65536]{0}', space=vmem, size = 0x10000, scoped, tag = 'input window, operand 5, single buffered']
    #allocation9 [shape = 's32[1]{0}', space=sflag, size = 0x4, scoped, tag = 'scoped memory for tpu_custom_call.1']
    %16 = vsyncpa [#allocation4], 0
    %17 = vsyncpa [#allocation6], 0
    %18 = vsyncpa [#allocation9], 0
    // Predicated region
    $region2: #{tpu_custom_call.1} parent=1 // pred_check
      _
    $region3: #{tpu_custom_call.1} parent=1 // pred_check_branch
      %20 = sbr.rel (0) target = $region5
    $region4: #{tpu_custom_call.1} parent=1 // pred_region
      %s22 = ssub.s32 128, 128
      %23 = vsyncadd [#allocation4], %s22
      %s25 = sshll.u32 [#allocation3], 4
      %s26 = int_to_ptr.vmem [resolvable:$true] %s25
      %28 = dma.hbm_to_vmem [thread:$0]  %s0, 128, %s26, [#allocation4]
    $region5: #{tpu_custom_call.1} parent=1 // pred_fallthru
      _
    // Predicated region
    $region6: #{tpu_custom_call.1} parent=1 // pred_check
      _
    $region7: #{tpu_custom_call.1} parent=1 // pred_check_branch
      %30 = sbr.rel (0) target = $region9
    $region8: #{tpu_custom_call.1} parent=1 // pred_region
      %s32 = ssub.s32 256, 256
      %33 = vsyncadd [#allocation6], %s32
      %s34 = sshll.u32 [#allocation5], 4
      %s35 = int_to_ptr.vmem [resolvable:$true] %s34
      %40 = dma.hbm_to_vmem [thread:$0]  %s1, 256, %s35, [#allocation6], 64, 64, 4
    $region9: #{tpu_custom_call.1} parent=1 // pred_fallthru
      _
    // Predicated region
    $region10: #{tpu_custom_call.1} parent=1 // pred_check
      _
    $region11: #{tpu_custom_call.1} parent=1 // pred_check_branch
      %42 = sbr.rel (0) target = $region13
    $region12: #{tpu_custom_call.1} parent=1 // pred_region
      _
    $region13: #{tpu_custom_call.1} parent=1 // pred_fallthru
      _
    // Predicated region
    $region14: #{tpu_custom_call.1} parent=1 // pred_check
      _
    $region15: #{tpu_custom_call.1} parent=1 // pred_check_branch
      %44 = sbr.rel (0) target = $region17
    $region16: #{tpu_custom_call.1} parent=1 // pred_region
      %s46 = ssub.s32 2048, 2048
      %47 = vsyncadd [#allocation6], %s46
      %s48 = sshll.u32 [#allocation7], 4
      %s49 = int_to_ptr.vmem [resolvable:$true] %s48
      %54 = dma.hbm_to_vmem [thread:$0]  %s3, 2048, %s49, [#allocation6], 128, 128, 8
    $region17: #{tpu_custom_call.1} parent=1 // pred_fallthru
      _
    // Predicated region
    $region18: #{tpu_custom_call.1} parent=1 // pred_check
      _
    $region19: #{tpu_custom_call.1} parent=1 // pred_check_branch
      %56 = sbr.rel (0) target = $region21
    $region20: #{tpu_custom_call.1} parent=1 // pred_region
      _
    $region21: #{tpu_custom_call.1} parent=1 // pred_fallthru
      _
    // Predicated region
    $region22: #{tpu_custom_call.1} parent=1 // pred_check
      _
    $region23: #{tpu_custom_call.1} parent=1 // pred_check_branch
      %58 = sbr.rel (0) target = $region25
    $region24: #{tpu_custom_call.1} parent=1 // pred_region
      %s60 = ssub.s32 2048, 2048
      %61 = vsyncadd [#allocation9], %s60
      %s62 = sshll.u32 [#allocation8], 4
      %s63 = int_to_ptr.vmem [resolvable:$true] %s62
      %68 = dma.hbm_to_vmem [thread:$0]  %s5, 2048, %s63, [#allocation9], 64, 64, 4
    $region25: #{tpu_custom_call.1} parent=1 // pred_fallthru
      _
    // Predicated region
    $region26: #{tpu_custom_call.1} parent=1 // pred_check
      _
    $region27: #{tpu_custom_call.1} parent=1 // pred_check_branch
      %70 = sbr.rel (0) target = $region29
    $region28: #{tpu_custom_call.1} parent=1 // pred_region
      _
    $region29: #{tpu_custom_call.1} parent=1 // pred_fallthru
      _
    // Predicated region
    $region30: #{tpu_custom_call.1} parent=1 // pred_check
      _
    $region31: #{tpu_custom_call.1} parent=1 // pred_check_branch
      %72 = sbr.rel (0) target = $region33
    $region32: #{tpu_custom_call.1} parent=1 // pred_region
      _
    $region33: #{tpu_custom_call.1} parent=1 // pred_fallthru
      _
    // Predicated region
    $region34: #{tpu_custom_call.1} parent=1 // pred_check
      _
    $region35: #{tpu_custom_call.1} parent=1 // pred_check_branch
      %74 = sbr.rel (0) target = $region37
    $region36: #{tpu_custom_call.1} parent=1 // pred_region
      _
    $region37: #{tpu_custom_call.1} parent=1 // pred_fallthru
      _
    // Predicated region
    $region38: #{tpu_custom_call.1} parent=1 // pred_check
      _
    $region39: #{tpu_custom_call.1} parent=1 // pred_check_branch
      %76 = sbr.rel (0) target = $region41
    $region40: #{tpu_custom_call.1} parent=1 // pred_region
      %77 = dma.done [#allocation4], 128
    $region41: #{tpu_custom_call.1} parent=1 // pred_fallthru
      _
    // Predicated region
    $region42: #{tpu_custom_call.1} parent=1 // pred_check
      _
    $region43: #{tpu_custom_call.1} parent=1 // pred_check_branch
      %79 = sbr.rel (0) target = $region45
    $region44: #{tpu_custom_call.1} parent=1 // pred_region
      %80 = dma.done [#allocation6], 256
    $region45: #{tpu_custom_call.1} parent=1 // pred_fallthru
      _
    // Predicated region
    $region46: #{tpu_custom_call.1} parent=1 // pred_check
      _
    $region47: #{tpu_custom_call.1} parent=1 // pred_check_branch
      %82 = sbr.rel (0) target = $region49
    $region48: #{tpu_custom_call.1} parent=1 // pred_region
      %83 = dma.done [#allocation6], 2048
    $region49: #{tpu_custom_call.1} parent=1 // pred_fallthru
      _
    // Predicated region
    $region50: #{tpu_custom_call.1} parent=1 // pred_check
      _
    $region51: #{tpu_custom_call.1} parent=1 // pred_check_branch
      %85 = sbr.rel (0) target = $region53
    $region52: #{tpu_custom_call.1} parent=1 // pred_region
      %86 = dma.done [#allocation9], 2048
    $region53: #{tpu_custom_call.1} parent=1 // pred_fallthru
      _
    %v88 = vld [vmem:[#allocation3] sm:$0xff]
    %v89 = vpack.c.bf16 %v88, %v88
    %v90 = vld [vmem:[#allocation5] sm:$0xf]
    %v91 = vld [vmem:[#allocation5 + $0x4] sm:$0xf]
    %v92 = vld [vmem:[#allocation5 + $0x8] sm:$0xf]
    %v93 = vld [vmem:[#allocation5 + $0xc] sm:$0xf]
    %v94 = vld [vmem:[%s2] sm:$0x1]
    %v96 = vlaneseq
    %v97 = vshrl.u32 %v96, 7
    %v98 = vsub.s32 0, %v97
    %v99 = vrot.slane %v94, %v98
    %v105 = vunpack.c.l.b16 %v90
    %v106 = vunpack.c.l.b16 %v91
    %v107 = vunpack.c.l.b16 %v92
    %v108 = vunpack.c.l.b16 %v93
    %v109 = vpack.c.b16 %v106, %v105
    %v110 = vpack.c.b16 %v108, %v107
    %vm113 = vcmask 261120
    %v115 = vsel %vm113, %v89, 0
    %117 = vmatprep.subr.bf16.mxu0 0
    %118 = vmatpush1.bf16.msra.mxu0 0
    %119 = vmatprep.subr.bf16.mxu0 0
    %120 = vmatpush1.bf16.msra.mxu0 0
    %121 = vmatprep.subr.bf16.mxu0 0
    %122 = vmatpush1.bf16.msra.mxu0 0
    %123 = vmatprep.subr.bf16.mxu0 0
    %124 = vmatpush1.bf16.msra.mxu0 0
    %125 = vmatprep.subr.bf16.mxu0 0
    %126 = vmatpush1.bf16.msra.mxu0 0
    %127 = vmatprep.subr.bf16.mxu0 0
    %128 = vmatpush1.bf16.msra.mxu0 0
    %129 = vmatprep.subr.bf16.mxu0 0
    %130 = vmatpush1.bf16.msra.mxu0 %v110
    %131 = vmatprep.subr.bf16.mxu0 0
    %132 = vmatpush1.bf16.msra.mxu0 %v109
    %133 = vmatprep.subr.bf16.mxu0 0
    %134 = vmatpush2.bf16.msra.mxu0 0
    %135 = vmatprep.subr.bf16.mxu0 0
    %136 = vmatpush2.bf16.msra.mxu0 0
    %137 = vmatprep.subr.bf16.mxu0 0
    %138 = vmatpush2.bf16.msra.mxu0 0
    %139 = vmatprep.subr.bf16.mxu0 0
    %140 = vmatpush2.bf16.msra.mxu0 0
    %141 = vmatprep.subr.bf16.mxu0 0
    %142 = vmatpush2.bf16.msra.mxu0 0
    %143 = vmatprep.subr.bf16.mxu0 0
    %144 = vmatpush2.bf16.msra.mxu0 0
    %145 = vmatprep.subr.bf16.mxu0 0
    %146 = vmatpush2.bf16.msra.mxu0 0
    %147 = vmatprep.subr.bf16.mxu0 0
    %148 = vmatpush2.bf16.msra.mxu0 0
    %149 = vmatprep.mubr.bf16.mxu0 0
    %150 = vmatmul.mubr.bf16.gmra.mxu0 %v115
    %v151 = vpop.f32.mrf.mxu0
    %v152 = vadd.f32 %v99, %v151
    %v153 = vpop.f32.mrf.mxu0
    %v154 = vpop.f32.mrf.mxu0
    %v155 = vpop.f32.mrf.mxu0
    %156 = vdwg.mxu0
    %v157 = vmax.f32 %v152, 0.0
    %v158 = vpack.c.bf16 %v157, %v157
    %v159 = vld [vmem:[#allocation7] sm:$0xff]
    %v160 = vld [vmem:[#allocation7 + $0x8] sm:$0xff]
    %v161 = vld [vmem:[#allocation7 + $0x10] sm:$0xff]
    %v162 = vld [vmem:[#allocation7 + $0x18] sm:$0xff]
    %v163 = vld [vmem:[#allocation7 + $0x20] sm:$0xff]
    %v164 = vld [vmem:[#allocation7 + $0x28] sm:$0xff]
    %v165 = vld [vmem:[#allocation7 + $0x30] sm:$0xff]
    %v166 = vld [vmem:[#allocation7 + $0x38] sm:$0xff]
    %v167 = vld [vmem:[#allocation7 + $0x40] sm:$0xff]
    %v168 = vld [vmem:[#allocation7 + $0x48] sm:$0xff]
    %v169 = vld [vmem:[#allocation7 + $0x50] sm:$0xff]
    %v170 = vld [vmem:[#allocation7 + $0x58] sm:$0xff]
    %v171 = vld [vmem:[#allocation7 + $0x60] sm:$0xff]
    %v172 = vld [vmem:[#allocation7 + $0x68] sm:$0xff]
    %v173 = vld [vmem:[#allocation7 + $0x70] sm:$0xff]
    %v174 = vld [vmem:[#allocation7 + $0x78] sm:$0xff]
    %v175 = vld [vmem:[%s4] sm:$0x3]
    %v177 = vlaneseq
    %v178 = vshrl.u32 %v177, 7
    %v179 = vsub.s32 0, %v178
    %v180 = vrot.slane %v175, %v179
    %v181 = vlaneseq
    %v182 = vshrl.u32 %v181, 7
    %v183 = vsub.s32 1, %v182
    %v184 = vrot.slane %v175, %v183
    %v203 = vunpack.c.l.b16 %v159
    %v204 = vunpack.c.h.b16 %v159
    %v205 = vunpack.c.l.b16 %v160
    %v206 = vunpack.c.h.b16 %v160
    %v207 = vunpack.c.l.b16 %v161
    %v208 = vunpack.c.h.b16 %v161
    %v209 = vunpack.c.l.b16 %v162
    %v210 = vunpack.c.h.b16 %v162
    %v211 = vunpack.c.l.b16 %v163
    %v212 = vunpack.c.h.b16 %v163
    %v213 = vunpack.c.l.b16 %v164
    %v214 = vunpack.c.h.b16 %v164
    %v215 = vunpack.c.l.b16 %v165
    %v216 = vunpack.c.h.b16 %v165
    %v217 = vunpack.c.l.b16 %v166
    %v218 = vunpack.c.h.b16 %v166
    %v219 = vunpack.c.l.b16 %v167
    %v220 = vunpack.c.h.b16 %v167
    %v221 = vunpack.c.l.b16 %v168
    %v222 = vunpack.c.h.b16 %v168
    %v223 = vunpack.c.l.b16 %v169
    %v224 = vunpack.c.h.b16 %v169
    %v225 = vunpack.c.l.b16 %v170
    %v226 = vunpack.c.h.b16 %v170
    %v227 = vunpack.c.l.b16 %v171
    %v228 = vunpack.c.h.b16 %v171
    %v229 = vunpack.c.l.b16 %v172
    %v230 = vunpack.c.h.b16 %v172
    %v231 = vunpack.c.l.b16 %v173
    %v232 = vunpack.c.h.b16 %v173
    %v233 = vunpack.c.l.b16 %v174
    %v234 = vunpack.c.h.b16 %v174
    %v235 = vpack.c.b16 %v205, %v203
    %v236 = vpack.c.b16 %v206, %v204
    %v237 = vpack.c.b16 %v209, %v207
    %v238 = vpack.c.b16 %v210, %v208
    %v239 = vpack.c.b16 %v213, %v211
    %v240 = vpack.c.b16 %v214, %v212
    %v241 = vpack.c.b16 %v217, %v215
    %v242 = vpack.c.b16 %v218, %v216
    %v243 = vpack.c.b16 %v221, %v219
    %v244 = vpack.c.b16 %v222, %v220
    %v245 = vpack.c.b16 %v225, %v223
    %v246 = vpack.c.b16 %v226, %v224
    %v247 = vpack.c.b16 %v229, %v227
    %v248 = vpack.c.b16 %v230, %v228
    %v249 = vpack.c.b16 %v233, %v231
    %v250 = vpack.c.b16 %v234, %v232
    %267 = vmatprep.subr.bf16.mxu0 %v250
    %268 = vmatpush1.bf16.msra.mxu0 %v249
    %269 = vmatprep.subr.bf16.mxu0 %v248
    %270 = vmatpush1.bf16.msra.mxu0 %v247
    %271 = vmatprep.subr.bf16.mxu0 %v246
    %272 = vmatpush1.bf16.msra.mxu0 %v245
    %273 = vmatprep.subr.bf16.mxu0 %v244
    %274 = vmatpush1.bf16.msra.mxu0 %v243
    %275 = vmatprep.subr.bf16.mxu0 %v242
    %276 = vmatpush1.bf16.msra.mxu0 %v241
    %277 = vmatprep.subr.bf16.mxu0 %v240
    %278 = vmatpush1.bf16.msra.mxu0 %v239
    %279 = vmatprep.subr.bf16.mxu0 %v238
    %280 = vmatpush1.bf16.msra.mxu0 %v237
    %281 = vmatprep.subr.bf16.mxu0 %v236
    %282 = vmatpush1.bf16.msra.mxu0 %v235
    %283 = vmatprep.subr.bf16.mxu0 0
    %284 = vmatpush2.bf16.msra.mxu0 0
    %285 = vmatprep.subr.bf16.mxu0 0
    %286 = vmatpush2.bf16.msra.mxu0 0
    %287 = vmatprep.subr.bf16.mxu0 0
    %288 = vmatpush2.bf16.msra.mxu0 0
    %289 = vmatprep.subr.bf16.mxu0 0
    %290 = vmatpush2.bf16.msra.mxu0 0
    %291 = vmatprep.subr.bf16.mxu0 0
    %292 = vmatpush2.bf16.msra.mxu0 0
    %293 = vmatprep.subr.bf16.mxu0 0
    %294 = vmatpush2.bf16.msra.mxu0 0
    %295 = vmatprep.subr.bf16.mxu0 0
    %296 = vmatpush2.bf16.msra.mxu0 0
    %297 = vmatprep.subr.bf16.mxu0 0
    %298 = vmatpush2.bf16.msra.mxu0 0
    %299 = vmatprep.mubr.bf16.mxu0 0
    %300 = vmatmul.mubr.bf16.gmra.mxu0 %v158
    %v301 = vpop.f32.mrf.mxu0
    %v302 = vadd.f32 %v180, %v301
    %v303 = vpop.f32.mrf.mxu0
    %v304 = vadd.f32 %v184, %v303
    %v305 = vpop.f32.mrf.mxu0
    %v306 = vpop.f32.mrf.mxu0
    %307 = vdwg.mxu0
    %v308 = vmax.f32 %v302, 0.0
    %v309 = vmax.f32 %v304, 0.0
    %v310 = vpack.c.bf16 %v308, %v308
    %v311 = vpack.c.bf16 %v309, %v309
    %v312 = vld [vmem:[#allocation8] sm:$0xf]
    %v313 = vld [vmem:[#allocation8 + $0x4] sm:$0xf]
    %v314 = vld [vmem:[#allocation8 + $0x8] sm:$0xf]
    %v315 = vld [vmem:[#allocation8 + $0xc] sm:$0xf]
    %v316 = vld [vmem:[#allocation8 + $0x10] sm:$0xf]
    %v317 = vld [vmem:[#allocation8 + $0x14] sm:$0xf]
    %v318 = vld [vmem:[#allocation8 + $0x18] sm:$0xf]
    %v319 = vld [vmem:[#allocation8 + $0x1c] sm:$0xf]
    %v320 = vld [vmem:[#allocation8 + $0x20] sm:$0xf]
    %v321 = vld [vmem:[#allocation8 + $0x24] sm:$0xf]
    %v322 = vld [vmem:[#allocation8 + $0x28] sm:$0xf]
    %v323 = vld [vmem:[#allocation8 + $0x2c] sm:$0xf]
    %v324 = vld [vmem:[#allocation8 + $0x30] sm:$0xf]
    %v325 = vld [vmem:[#allocation8 + $0x34] sm:$0xf]
    %v326 = vld [vmem:[#allocation8 + $0x38] sm:$0xf]
    %v327 = vld [vmem:[#allocation8 + $0x3c] sm:$0xf]
    %v328 = vld [vmem:[#allocation8 + $0x40] sm:$0xf]
    %v329 = vld [vmem:[#allocation8 + $0x44] sm:$0xf]
    %v330 = vld [vmem:[#allocation8 + $0x48] sm:$0xf]
    %v331 = vld [vmem:[#allocation8 + $0x4c] sm:$0xf]
    %v332 = vld [vmem:[#allocation8 + $0x50] sm:$0xf]
    %v333 = vld [vmem:[#allocation8 + $0x54] sm:$0xf]
    %v334 = vld [vmem:[#allocation8 + $0x58] sm:$0xf]
    %v335 = vld [vmem:[#allocation8 + $0x5c] sm:$0xf]
    %v336 = vld [vmem:[#allocation8 + $0x60] sm:$0xf]
    %v337 = vld [vmem:[#allocation8 + $0x64] sm:$0xf]
    %v338 = vld [vmem:[#allocation8 + $0x68] sm:$0xf]
    %v339 = vld [vmem:[#allocation8 + $0x6c] sm:$0xf]
    %v340 = vld [vmem:[#allocation8 + $0x70] sm:$0xf]
    %v341 = vld [vmem:[#allocation8 + $0x74] sm:$0xf]
    %v342 = vld [vmem:[#allocation8 + $0x78] sm:$0xf]
    %v343 = vld [vmem:[#allocation8 + $0x7c] sm:$0xf]
    %v344 = vld [vmem:[%s6] sm:$0x1]
    %v346 = vlaneseq
    %v347 = vshrl.u32 %v346, 7
    %v348 = vsub.s32 0, %v347
    %v349 = vrot.slane %v344, %v348
    %v383 = vunpack.c.l.b16 %v312
    %v384 = vunpack.c.l.b16 %v313
    %v385 = vunpack.c.l.b16 %v314
    %v386 = vunpack.c.l.b16 %v315
    %v387 = vunpack.c.l.b16 %v316
    %v388 = vunpack.c.l.b16 %v317
    %v389 = vunpack.c.l.b16 %v318
    %v390 = vunpack.c.l.b16 %v319
    %v391 = vunpack.c.l.b16 %v320
    %v392 = vunpack.c.l.b16 %v321
    %v393 = vunpack.c.l.b16 %v322
    %v394 = vunpack.c.l.b16 %v323
    %v395 = vunpack.c.l.b16 %v324
    %v396 = vunpack.c.l.b16 %v325
    %v397 = vunpack.c.l.b16 %v326
    %v398 = vunpack.c.l.b16 %v327
    %v399 = vunpack.c.l.b16 %v328
    %v400 = vunpack.c.l.b16 %v329
    %v401 = vunpack.c.l.b16 %v330
    %v402 = vunpack.c.l.b16 %v331
    %v403 = vunpack.c.l.b16 %v332
    %v404 = vunpack.c.l.b16 %v333
    %v405 = vunpack.c.l.b16 %v334
    %v406 = vunpack.c.l.b16 %v335
    %v407 = vunpack.c.l.b16 %v336
    %v408 = vunpack.c.l.b16 %v337
    %v409 = vunpack.c.l.b16 %v338
    %v410 = vunpack.c.l.b16 %v339
    %v411 = vunpack.c.l.b16 %v340
    %v412 = vunpack.c.l.b16 %v341
    %v413 = vunpack.c.l.b16 %v342
    %v414 = vunpack.c.l.b16 %v343
    %v415 = vpack.c.b16 %v384, %v383
    %v416 = vpack.c.b16 %v386, %v385
    %v417 = vpack.c.b16 %v388, %v387
    %v418 = vpack.c.b16 %v390, %v389
    %v419 = vpack.c.b16 %v392, %v391
    %v420 = vpack.c.b16 %v394, %v393
    %v421 = vpack.c.b16 %v396, %v395
    %v422 = vpack.c.b16 %v398, %v397
    %v423 = vpack.c.b16 %v400, %v399
    %v424 = vpack.c.b16 %v402, %v401
    %v425 = vpack.c.b16 %v404, %v403
    %v426 = vpack.c.b16 %v406, %v405
    %v427 = vpack.c.b16 %v408, %v407
    %v428 = vpack.c.b16 %v410, %v409
    %v429 = vpack.c.b16 %v412, %v411
    %v430 = vpack.c.b16 %v414, %v413
    %447 = vmatprep.subr.bf16.mxu0 0
    %448 = vmatpush1.bf16.msra.mxu0 %v422
    %449 = vmatprep.subr.bf16.mxu0 0
    %450 = vmatpush1.bf16.msra.mxu0 %v421
    %451 = vmatprep.subr.bf16.mxu0 0
    %452 = vmatpush1.bf16.msra.mxu0 %v420
    %453 = vmatprep.subr.bf16.mxu0 0
    %454 = vmatpush1.bf16.msra.mxu0 %v419
    %455 = vmatprep.subr.bf16.mxu0 0
    %456 = vmatpush1.bf16.msra.mxu0 %v418
    %457 = vmatprep.subr.bf16.mxu0 0
    %458 = vmatpush1.bf16.msra.mxu0 %v417
    %459 = vmatprep.subr.bf16.mxu0 0
    %460 = vmatpush1.bf16.msra.mxu0 %v416
    %461 = vmatprep.subr.bf16.mxu0 0
    %462 = vmatpush1.bf16.msra.mxu0 %v415
    %463 = vmatprep.subr.bf16.mxu0 0
    %464 = vmatpush2.bf16.msra.mxu0 %v430
    %465 = vmatprep.subr.bf16.mxu0 0
    %466 = vmatpush2.bf16.msra.mxu0 %v429
    %467 = vmatprep.subr.bf16.mxu0 0
    %468 = vmatpush2.bf16.msra.mxu0 %v428
    %469 = vmatprep.subr.bf16.mxu0 0
    %470 = vmatpush2.bf16.msra.mxu0 %v427
    %471 = vmatprep.subr.bf16.mxu0 0
    %472 = vmatpush2.bf16.msra.mxu0 %v426
    %473 = vmatprep.subr.bf16.mxu0 0
    %474 = vmatpush2.bf16.msra.mxu0 %v425
    %475 = vmatprep.subr.bf16.mxu0 0
    %476 = vmatpush2.bf16.msra.mxu0 %v424
    %477 = vmatprep.subr.bf16.mxu0 0
    %478 = vmatpush2.bf16.msra.mxu0 %v423
    %479 = vmatprep.mubr.bf16.mxu0 %v311
    %480 = vmatmul.mubr.bf16.gmra.mxu0 %v310
    %v481 = vpop.f32.mrf.mxu0
    %v482 = vadd.f32 %v349, %v481
    %v483 = vpop.f32.mrf.mxu0
    %v484 = vpop.f32.mrf.mxu0
    %v485 = vpop.f32.mrf.mxu0
    %486 = vdwg.mxu0
    %v487 = vmax.f32 %v482, 0.0
    %v488 = vld [vmem:[%s7] sm:$0x1]
    %v490 = vlaneseq
    %v491 = vshrl.u32 %v490, 7
    %v492 = vsub.s32 0, %v491
    %v493 = vrot.slane %v488, %v492
    %v495 = vmul.f32 %v487, %v493
    %496 = vadd.xlane.f32.xlu0 %v495
    %v497 = vpop.xlane.xlu0 %496
    %v498 = vld [vmem:[#allocation2] sm:$0x1]
    %v500 = vlaneseq
    %v501 = vshrl.u32 %v500, 7
    %v502 = vsub.s32 0, %v501
    %v503 = vrot.slane %v498, %v502
    %v505 = vadd.f32 %v497, %v503
    %vm506 = vcmask 7168
    %507 = vst.msk [vmem:[%s9] sm:$0xff] %vm506, %v505
    // Predicated region
    $region54: #{tpu_custom_call.1} parent=1 // pred_check
      _
    $region55: #{tpu_custom_call.1} parent=1 // pred_check_branch
      %509 = sbr.rel (0) target = $region57
    $region56: #{tpu_custom_call.1} parent=1 // pred_region
      _
    $region57: #{tpu_custom_call.1} parent=1 // pred_fallthru
      _
    // Predicated region
    $region58: #{tpu_custom_call.1} parent=1 // pred_check
      _
    $region59: #{tpu_custom_call.1} parent=1 // pred_check_branch
      %511 = sbr.rel (0) target = $region61
    $region60: #{tpu_custom_call.1} parent=1 // pred_region
      _
    $region61: #{tpu_custom_call.1} parent=1 // pred_fallthru
      _
    %512 = vsyncpa [#allocation4], 1
    %513 = vsyncpa [#allocation6], 1
    %514 = vsyncpa [#allocation9], 1

</llo_original>
